<compile_context>
chip_gen: v5e
topology: v5e:2x2
jax: 0.10.0
libtpu: 0.0.40
codegen_flags: <defaults>
</compile_context>

<pallas_src>
import math

import jax
import jax.numpy as jnp
from jax.experimental import pallas as pl
from jax.experimental.pallas import tpu as pltpu

EPS = 1e-5
LANE = 128
SUBLANE = 8
TILE_M = 512            # v7x-safe; v5e/v6e can use 1024 for large M
VMEM_LIMIT = 32 * 1024 * 1024


def _round_up(x, m):
    return (x + m - 1) // m * m


# ---------- Pass 1: tiled MXU matmul + per-tile per-channel partial stats ----------
def _stats_kernel(p_ref, w_ref, stats_ref):
    # p_ref: (TM, Kp) bf16, w_ref: (Kp, Cp) bf16 (resident), stats_ref: (1, 2, Cp) f32
    conv = jnp.dot(p_ref[...], w_ref[...], preferred_element_type=jnp.float32)
    s = jnp.sum(conv, axis=0, keepdims=True)            # (1, Cp)
    sq = jnp.sum(conv * conv, axis=0, keepdims=True)    # (1, Cp)
    stats_ref[...] = jnp.concatenate([s, sq], axis=0)[None, :, :]


# ---------- Pass 2: tiled MXU matmul + fused per-channel scale/bias ----------
def _affine_kernel(p_ref, w_ref, scale_ref, bias_ref, out_ref):
    # scale/bias are precomputed per channel -> one FMA per element in the epilogue.
    conv = jnp.dot(p_ref[...], w_ref[...], preferred_element_type=jnp.float32)
    out_ref[...] = conv * scale_ref[...] + bias_ref[...]


def _im2col_bf16(x_nchw, kernel_size, stride, padding):
    """Plain-JAX glue: NCHW -> bf16 (M, K) patches with patch order (kh, kw, Cin)."""
    n, cin, h, w = x_nchw.shape
    ho = (h + 2 * padding - kernel_size) // stride + 1
    wo = (w + 2 * padding - kernel_size) // stride + 1
    x_nhwc = jnp.transpose(x_nchw, (0, 2, 3, 1)).astype(jnp.bfloat16)
    xp = jnp.pad(x_nhwc, ((0, 0), (padding, padding), (padding, padding), (0, 0)))
    cols = []
    for kh in range(kernel_size):
        for kw in range(kernel_size):
            cols.append(xp[:, kh:kh + stride * ho:stride, kw:kw + stride * wo:stride, :])
    patches = jnp.stack(cols, axis=3)                               # (N, Ho, Wo, k*k, Cin)
    patches = patches.reshape(n * ho * wo, kernel_size * kernel_size * cin)
    return patches, ho, wo


def conv_norm_forward(x_nchw, conv_weight, bn_gamma, bn_beta,
                      kernel_size=3, stride=2, padding=1, tile_m=TILE_M):
    """ConvNorm forward.  x_nchw: (N, Cin, H, W), conv_weight: (Cout, Cin, k, k)."""
    n, cin, h, w = x_nchw.shape
    cout = conv_weight.shape[0]

    patches, ho, wo = _im2col_bf16(x_nchw, kernel_size, stride, padding)
    m, k = patches.shape

    # Pad for lane-dense / MXU-aligned layout.
    kp = _round_up(k, LANE)
    cp = _round_up(cout, LANE)
    tm = min(tile_m, _round_up(m, SUBLANE))
    mp = _round_up(m, tm)
    num_tiles = mp // tm

    patches = jnp.pad(patches, ((0, mp - m), (0, kp - k)))          # bf16, zero pad
    w2d = jnp.transpose(conv_weight, (2, 3, 1, 0)).reshape(k, cout).astype(jnp.float32)
    w2d = jnp.pad(w2d, ((0, kp - k), (0, cp - cout))).astype(jnp.bfloat16)

    flops = 2 * mp * kp * cp
    cparams = pltpu.CompilerParams(
        dimension_semantics=("parallel",),          # M tiles are independent
        vmem_limit_bytes=VMEM_LIMIT)

    # ---- Pass 1: partial channel sums / sums-of-squares per M tile ----
    stats = pl.pallas_call(
        _stats_kernel,
        out_shape=jax.ShapeDtypeStruct((num_tiles, 2, cp), jnp.float32),
        grid=(num_tiles,),
        in_specs=[
            pl.BlockSpec((tm, kp), lambda i: (i, 0)),
            pl.BlockSpec((kp, cp), lambda i: (0, 0)),
        ],
        out_specs=pl.BlockSpec((1, 2, cp), lambda i: (i, 0, 0)),
        compiler_params=cparams,
        cost_estimate=pl.CostEstimate(
            flops=flops, transcendentals=0,
            bytes_accessed=patches.size * 2 + w2d.size * 2 + num_tiles * 2 * cp * 4),
    )(patches, w2d)

    # ---- Tiny f32 glue: batch statistics -> per-channel scale/bias ----
    # (E[x^2]-E[x]^2 with f32 accumulators; padded rows/channels contribute 0.)
    count = jnp.float32(m)
    ch_sum = jnp.sum(stats[:, 0, :cout], axis=0)
    ch_sq = jnp.sum(stats[:, 1, :cout], axis=0)
    mean = ch_sum / count
    var = jnp.maximum(ch_sq / count - mean * mean, 0.0)             # biased variance
    scale = bn_gamma.astype(jnp.float32) * jax.lax.rsqrt(var + EPS)
    bias = bn_beta.astype(jnp.float32) - mean * scale
    scale_p = jnp.pad(scale, (0, cp - cout)).reshape(1, cp)
    bias_p = jnp.pad(bias, (0, cp - cout)).reshape(1, cp)

    # ---- Pass 2: recompute conv tile + fused affine, lane-dense output ----
    out_flat = pl.pallas_call(
        _affine_kernel,
        out_shape=jax.ShapeDtypeStruct((mp, cp), jnp.float32),
        grid=(num_tiles,),
        in_specs=[
            pl.BlockSpec((tm, kp), lambda i: (i, 0)),
            pl.BlockSpec((kp, cp), lambda i: (0, 0)),
            pl.BlockSpec((1, cp), lambda i: (0, 0)),
            pl.BlockSpec((1, cp), lambda i: (0, 0)),
        ],
        out_specs=pl.BlockSpec((tm, cp), lambda i: (i, 0)),
        compiler_params=cparams,
        cost_estimate=pl.CostEstimate(
            flops=flops, transcendentals=0,
            bytes_accessed=patches.size * 2 + w2d.size * 2 + mp * cp * 4),
    )(patches, w2d, scale_p, bias_p)

    out_nhwc = out_flat[:m, :cout].reshape(n, ho, wo, cout)
    return jnp.transpose(out_nhwc, (0, 3, 1, 2))                    # back to NCHW


def _reference(x_nchw, conv_weight, bn_gamma, bn_beta,
               kernel_size=3, stride=2, padding=1):
    """Pure-JAX f32 reference (lax.conv + batch-stat BN)."""
    conv = jax.lax.conv_general_dilated(
        x_nchw.astype(jnp.float32), conv_weight.astype(jnp.float32),
        window_strides=(stride, stride),
        padding=[(padding, padding), (padding, padding)],
        dimension_numbers=("NCHW", "OIHW", "NCHW"))
    mean = jnp.mean(conv, axis=(0, 2, 3), keepdims=True)
    var = jnp.mean((conv - mean) ** 2, axis=(0, 2, 3), keepdims=True)
    g = bn_gamma.reshape(1, -1, 1, 1)
    b = bn_beta.reshape(1, -1, 1, 1)
    return (conv - mean) * jax.lax.rsqrt(var + EPS) * g + b


if __name__ == "__main__":
    key = jax.random.PRNGKey(0)
    k_x, k_w, k_g, k_b = jax.random.split(key, 4)

    N, Cin, H, W = 2, 4, 16, 16
    Cout, K = 8, 3

    x = jax.random.normal(k_x, (N, Cin, H, W), dtype=jnp.float32)

    fan_in = Cin * K * K
    bound = 1.0 / math.sqrt(fan_in)
    conv_w = jax.random.uniform(k_w, (Cout, Cin, K, K),
                                minval=-bound, maxval=bound, dtype=jnp.float32)
    gamma = jax.random.uniform(k_g, (Cout,), minval=0.5, maxval=1.5, dtype=jnp.float32)
    beta = 0.1 * jax.random.normal(k_b, (Cout,), dtype=jnp.float32)

    out = jax.block_until_ready(conv_norm_forward(x, conv_w, gamma, beta))
    ref = jax.block_until_ready(_reference(x, conv_w, gamma, beta))

    assert out.shape == (N, Cout, H // 2, W // 2), out.shape
    # bf16 matmul operands -> tolerance accounts for bf16 rounding; BN math is f32.
    assert jnp.allclose(out, ref, atol=5e-2, rtol=5e-2), float(jnp.max(jnp.abs(out - ref)))

    print("KERNEL_OK")
</pallas_src>

<mosaic_0001>
module attributes {stable_mosaic.version = 11 : i64} {
  func.func @_stats_kernel(%arg0: i32, %arg1: memref<128x128xbf16, #tpu.memory_space<vmem>>, %arg2: memref<128x128xbf16, #tpu.memory_space<vmem>>, %arg3: memref<1x2x128xf32, #tpu.memory_space<vmem>>) attributes {dimension_semantics = [#tpu.dimension_semantics<parallel>], iteration_bounds = array<i64: 1>, scalar_prefetch = 0 : i64, scratch_operands = 0 : i64, tpu.core_type = #tpu.core_type<tc>, window_params = [{transform_indices = @transform_0, window_bounds = array<i64: 128, 128>}, {pipeline_mode = #tpu.pipeline_mode<synchronous>, transform_indices = @transform_1, window_bounds = array<i64: 128, 128>}, {transform_indices = @transform_2, window_bounds = array<i64: 1, 2, 128>}]} {
    %c0 = arith.constant 0 : index
    %c0_0 = arith.constant 0 : index
    %0 = vector.load %arg1[%c0, %c0_0] : memref<128x128xbf16, #tpu.memory_space<vmem>>, vector<128x128xbf16>
    %c0_1 = arith.constant 0 : index
    %c0_2 = arith.constant 0 : index
    %1 = vector.load %arg2[%c0_1, %c0_2] : memref<128x128xbf16, #tpu.memory_space<vmem>>, vector<128x128xbf16>
    %cst = arith.constant dense<0.000000e+00> : vector<128x128xf32>
    %2 = tpu.matmul %0, %1, %cst {dimension_numbers = #tpu.dot_dimension_numbers<[1], [0], [0], [1], [0, 0, 1, 1], [], []>} : vector<128x128xbf16>, vector<128x128xbf16>, vector<128x128xf32> -> vector<128x128xf32>
    %cst_3 = arith.constant dense<0.000000e+00> : vector<128xf32>
    %3 = vector.multi_reduction <add>, %2, %cst_3 [0] : vector<128x128xf32> to vector<128xf32>
    %4 = vector.shape_cast %3 : vector<128xf32> to vector<1x128xf32>
    %5 = arith.mulf %2, %2 : vector<128x128xf32>
    %cst_4 = arith.constant dense<0.000000e+00> : vector<128xf32>
    %6 = vector.multi_reduction <add>, %5, %cst_4 [0] : vector<128x128xf32> to vector<128xf32>
    %7 = vector.shape_cast %6 : vector<128xf32> to vector<1x128xf32>
    %8 = tpu.concatenate %4, %7 in 0 : vector<1x128xf32>, vector<1x128xf32> -> vector<2x128xf32>
    %9 = vector.shape_cast %8 : vector<2x128xf32> to vector<1x2x128xf32>
    %c0_5 = arith.constant 0 : index
    %c0_6 = arith.constant 0 : index
    %c0_7 = arith.constant 0 : index
    %10 = vector.load %arg3[%c0_5, %c0_6, %c0_7] : memref<1x2x128xf32, #tpu.memory_space<vmem>>, vector<1x2x128xf32>
    tpu.vector_store %arg3[%c0_5, %c0_6, %c0_7], %9 {strides = array<i32>} : memref<1x2x128xf32, #tpu.memory_space<vmem>>, vector<1x2x128xf32>,
    return
  }
  func.func @transform_0(%arg0: i32) -> (i32, i32) {
    %c0_i32 = arith.constant 0 : i32
    %c0_i32_0 = arith.constant 0 : i32
    return %arg0, %c0_i32 : i32, i32
  }
  func.func @transform_1(%arg0: i32) -> (i32, i32) {
    %c0_i32 = arith.constant 0 : i32
    %c0_i32_0 = arith.constant 0 : i32
    %c0_i32_1 = arith.constant 0 : i32
    return %c0_i32, %c0_i32_0 : i32, i32
  }
  func.func @transform_2(%arg0: i32) -> (i32, i32, i32) {
    %c0_i32 = arith.constant 0 : i32
    %c0_i32_0 = arith.constant 0 : i32
    %c0_i32_1 = arith.constant 0 : i32
    return %arg0, %c0_i32, %c0_i32_0 : i32, i32, i32
  }
}

</mosaic_0001>

<llo_original>
// kernel: tpu_custom_call.1
$region0: #{tpu_custom_call.1}
  #allocation0 [shape = 'u32[]', space=smem, size = 0x4, offset = 0x4, fixed_abs, tag = 'smem constant byte address 0x4 - core index']
  #allocation1 [shape = 'u32[72,128]{1,0:T(1,128)}', space=vmem, size = 0x9000, scoped, tag = 'internal scratch']
  %s0 = inlined_call_operand.hbm [shape: bf16[128,128], index: 0, kind: input, shape index: {}]
  %s1 = inlined_call_operand.hbm [shape: bf16[128,128], index: 1, kind: input, shape index: {}]
  %s2 = inlined_call_operand.hbm [shape: f32[1,2,128], index: 2, kind: output, shape index: {}]
  %s3 = sld [smem:[#allocation0]]
  $region26: #{tpu_custom_call.1} parent=0
    _
  %s5 = ssub.s32 1, %s3
  %s6 = scalar_select 0, %s5, %s3
  $region1: #{tpu_custom_call.1} parent=0
    #allocation2 [shape = 'u8[32768]{0}', space=vmem, size = 0x8000, scoped, tag = 'input window, operand 0, single buffered']
    #allocation3 [shape = 's32[1]{0}', space=sflag, size = 0x4, scoped, tag = 'scoped memory for tpu_custom_call.1']
    #allocation4 [shape = 's32[1]{0}', space=sflag, size = 0x4, scoped, tag = 'scoped memory for tpu_custom_call.1']
    #allocation5 [shape = 'u8[32768]{0}', space=vmem, size = 0x8000, scoped, tag = 'input window, operand 1, single buffered']
    #allocation6 [shape = 's32[1]{0}', space=sflag, size = 0x4, scoped, tag = 'scoped memory for tpu_custom_call.1']
    #allocation7 [shape = 'u8[1024]{0}', space=vmem, size = 0x400, scoped, tag = 'output window, operand 0, single buffered']
    %7 = vsyncpa [#allocation3], 0
    %8 = vsyncpa [#allocation6], 0
    %9 = vsyncpa [#allocation4], 0
    // Predicated region
    $region2: #{tpu_custom_call.1} parent=1 // pred_check
      _
    $region3: #{tpu_custom_call.1} parent=1 // pred_check_branch
      %11 = sbr.rel (0) target = $region5
    $region4: #{tpu_custom_call.1} parent=1 // pred_region
      %13 = vsyncadd [#allocation3], 0
      %s14 = sshll.u32 %s0, 4
      %s15 = int_to_ptr.hbm [resolvable:$true] %s14
      %s16 = sshll.u32 [#allocation2], 4
      %s17 = int_to_ptr.vmem [resolvable:$true] %s16
      %22 = dma.hbm_to_vmem [thread:$0]  %s15, 1024, %s17, [#allocation3], 64, 64, 4
    $region5: #{tpu_custom_call.1} parent=1 // pred_fallthru
      _
    // Predicated region
    $region6: #{tpu_custom_call.1} parent=1 // pred_check
      _
    $region7: #{tpu_custom_call.1} parent=1 // pred_check_branch
      %24 = sbr.rel (0) target = $region9
    $region8: #{tpu_custom_call.1} parent=1 // pred_region
      %26 = vsyncadd [#allocation6], 0
      %s27 = sshll.u32 %s1, 4
      %s28 = int_to_ptr.hbm [resolvable:$true] %s27
      %s29 = sshll.u32 [#allocation5], 4
      %s30 = int_to_ptr.vmem [resolvable:$true] %s29
      %35 = dma.hbm_to_vmem [thread:$0]  %s28, 1024, %s30, [#allocation6], 64, 64, 4
    $region9: #{tpu_custom_call.1} parent=1 // pred_fallthru
      _
    // Predicated region
    $region10: #{tpu_custom_call.1} parent=1 // pred_check
      _
    $region11: #{tpu_custom_call.1} parent=1 // pred_check_branch
      %37 = sbr.rel (0) target = $region13
    $region12: #{tpu_custom_call.1} parent=1 // pred_region
      %39 = dma.done [#allocation3], 1024
    $region13: #{tpu_custom_call.1} parent=1 // pred_fallthru
      _
    // Predicated region
    $region14: #{tpu_custom_call.1} parent=1 // pred_check
      _
    $region15: #{tpu_custom_call.1} parent=1 // pred_check_branch
      %41 = sbr.rel (0) target = $region17
    $region16: #{tpu_custom_call.1} parent=1 // pred_region
      %43 = dma.done [#allocation6], 1024
    $region17: #{tpu_custom_call.1} parent=1 // pred_fallthru
      _
    %v44 = vld [vmem:[#allocation2] sm:$0xf]
    %v45 = vld [vmem:[#allocation2 + $0x4] sm:$0xf]
    %v46 = vld [vmem:[#allocation2 + $0x8] sm:$0xf]
    %v47 = vld [vmem:[#allocation2 + $0xc] sm:$0xf]
    %v48 = vld [vmem:[#allocation2 + $0x10] sm:$0xf]
    %v49 = vld [vmem:[#allocation2 + $0x14] sm:$0xf]
    %v50 = vld [vmem:[#allocation2 + $0x18] sm:$0xf]
    %v51 = vld [vmem:[#allocation2 + $0x1c] sm:$0xf]
    %v52 = vld [vmem:[#allocation2 + $0x20] sm:$0xf]
    %v53 = vld [vmem:[#allocation2 + $0x24] sm:$0xf]
    %v54 = vld [vmem:[#allocation2 + $0x28] sm:$0xf]
    %v55 = vld [vmem:[#allocation2 + $0x2c] sm:$0xf]
    %v56 = vld [vmem:[#allocation2 + $0x30] sm:$0xf]
    %v57 = vld [vmem:[#allocation2 + $0x34] sm:$0xf]
    %v58 = vld [vmem:[#allocation2 + $0x38] sm:$0xf]
    %v59 = vld [vmem:[#allocation2 + $0x3c] sm:$0xf]
    %v60 = vld [vmem:[#allocation5] sm:$0xf]
    %v61 = vld [vmem:[#allocation5 + $0x4] sm:$0xf]
    %v62 = vld [vmem:[#allocation5 + $0x8] sm:$0xf]
    %v63 = vld [vmem:[#allocation5 + $0xc] sm:$0xf]
    %v64 = vld [vmem:[#allocation5 + $0x10] sm:$0xf]
    %v65 = vld [vmem:[#allocation5 + $0x14] sm:$0xf]
    %v66 = vld [vmem:[#allocation5 + $0x18] sm:$0xf]
    %v67 = vld [vmem:[#allocation5 + $0x1c] sm:$0xf]
    %v68 = vld [vmem:[#allocation5 + $0x20] sm:$0xf]
    %v69 = vld [vmem:[#allocation5 + $0x24] sm:$0xf]
    %v70 = vld [vmem:[#allocation5 + $0x28] sm:$0xf]
    %v71 = vld [vmem:[#allocation5 + $0x2c] sm:$0xf]
    %v72 = vld [vmem:[#allocation5 + $0x30] sm:$0xf]
    %v73 = vld [vmem:[#allocation5 + $0x34] sm:$0xf]
    %v74 = vld [vmem:[#allocation5 + $0x38] sm:$0xf]
    %v75 = vld [vmem:[#allocation5 + $0x3c] sm:$0xf]
    %v92 = vunpack.c.l.b16 %v44
    %v93 = vunpack.c.l.b16 %v45
    %v94 = vunpack.c.l.b16 %v46
    %v95 = vunpack.c.l.b16 %v47
    %v96 = vunpack.c.l.b16 %v48
    %v97 = vunpack.c.l.b16 %v49
    %v98 = vunpack.c.l.b16 %v50
    %v99 = vunpack.c.l.b16 %v51
    %v100 = vunpack.c.l.b16 %v52
    %v101 = vunpack.c.l.b16 %v53
    %v102 = vunpack.c.l.b16 %v54
    %v103 = vunpack.c.l.b16 %v55
    %v104 = vunpack.c.l.b16 %v56
    %v105 = vunpack.c.l.b16 %v57
    %v106 = vunpack.c.l.b16 %v58
    %v107 = vunpack.c.l.b16 %v59
    %v108 = vpack.c.b16 %v93, %v92
    %v109 = vpack.c.b16 %v95, %v94
    %v110 = vpack.c.b16 %v97, %v96
    %v111 = vpack.c.b16 %v99, %v98
    %v112 = vpack.c.b16 %v101, %v100
    %v113 = vpack.c.b16 %v103, %v102
    %v114 = vpack.c.b16 %v105, %v104
    %v115 = vpack.c.b16 %v107, %v106
    %v140 = vunpack.c.l.b16 %v60
    %v141 = vunpack.c.l.b16 %v61
    %v142 = vunpack.c.l.b16 %v62
    %v143 = vunpack.c.l.b16 %v63
    %v144 = vunpack.c.l.b16 %v64
    %v145 = vunpack.c.l.b16 %v65
    %v146 = vunpack.c.l.b16 %v66
    %v147 = vunpack.c.l.b16 %v67
    %v148 = vunpack.c.l.b16 %v68
    %v149 = vunpack.c.l.b16 %v69
    %v150 = vunpack.c.l.b16 %v70
    %v151 = vunpack.c.l.b16 %v71
    %v152 = vunpack.c.l.b16 %v72
    %v153 = vunpack.c.l.b16 %v73
    %v154 = vunpack.c.l.b16 %v74
    %v155 = vunpack.c.l.b16 %v75
    %v156 = vpack.c.b16 %v141, %v140
    %v157 = vpack.c.b16 %v143, %v142
    %v158 = vpack.c.b16 %v145, %v144
    %v159 = vpack.c.b16 %v147, %v146
    %v160 = vpack.c.b16 %v149, %v148
    %v161 = vpack.c.b16 %v151, %v150
    %v162 = vpack.c.b16 %v153, %v152
    %v163 = vpack.c.b16 %v155, %v154
    %172 = vmatpush.bf16.msra.mxu0 %v163
    %173 = vmatpush.bf16.msra.mxu0 %v162
    %174 = vmatpush.bf16.msra.mxu0 %v161
    %175 = vmatpush.bf16.msra.mxu0 %v160
    %176 = vmatpush.bf16.msra.mxu0 %v159
    %177 = vmatpush.bf16.msra.mxu0 %v158
    %178 = vmatpush.bf16.msra.mxu0 %v157
    %179 = vmatpush.bf16.msra.mxu0 %v156
    %180 = vmatmul.bf16.gmra.mxu0 %v108
    %v181 = vpop.f32.mrf.mxu0
    %v182 = vadd.f32 0.0, %v181
    %v183 = vpop.f32.mrf.mxu0
    %v184 = vadd.f32 0.0, %v183
    %185 = vmatmul.bf16.gmra.mxu0 %v109
    %v186 = vpop.f32.mrf.mxu0
    %v187 = vadd.f32 0.0, %v186
    %v188 = vpop.f32.mrf.mxu0
    %v189 = vadd.f32 0.0, %v188
    %190 = vmatmul.bf16.gmra.mxu0 %v110
    %v191 = vpop.f32.mrf.mxu0
    %v192 = vadd.f32 0.0, %v191
    %v193 = vpop.f32.mrf.mxu0
    %v194 = vadd.f32 0.0, %v193
    %195 = vmatmul.bf16.gmra.mxu0 %v111
    %v196 = vpop.f32.mrf.mxu0
    %v197 = vadd.f32 0.0, %v196
    %v198 = vpop.f32.mrf.mxu0
    %v199 = vadd.f32 0.0, %v198
    %200 = vmatmul.bf16.gmra.mxu0 %v112
    %v201 = vpop.f32.mrf.mxu0
    %v202 = vadd.f32 0.0, %v201
    %v203 = vpop.f32.mrf.mxu0
    %v204 = vadd.f32 0.0, %v203
    %205 = vmatmul.bf16.gmra.mxu0 %v113
    %v206 = vpop.f32.mrf.mxu0
    %v207 = vadd.f32 0.0, %v206
    %v208 = vpop.f32.mrf.mxu0
    %v209 = vadd.f32 0.0, %v208
    %210 = vmatmul.bf16.gmra.mxu0 %v114
    %v211 = vpop.f32.mrf.mxu0
    %v212 = vadd.f32 0.0, %v211
    %v213 = vpop.f32.mrf.mxu0
    %v214 = vadd.f32 0.0, %v213
    %215 = vmatmul.bf16.gmra.mxu0 %v115
    %v216 = vpop.f32.mrf.mxu0
    %v217 = vadd.f32 0.0, %v216
    %v218 = vpop.f32.mrf.mxu0
    %v219 = vadd.f32 0.0, %v218
    %220 = vdwg.mxu0
    %v221 = vadd.f32 %v182, %v184
    %v222 = vadd.f32 %v221, %v187
    %v223 = vadd.f32 %v222, %v189
    %v224 = vadd.f32 %v223, %v192
    %v225 = vadd.f32 %v224, %v194
    %v226 = vadd.f32 %v225, %v197
    %v227 = vadd.f32 %v226, %v199
    %v228 = vadd.f32 %v227, %v202
    %v229 = vadd.f32 %v228, %v204
    %v230 = vadd.f32 %v229, %v207
    %v231 = vadd.f32 %v230, %v209
    %v232 = vadd.f32 %v231, %v212
    %v233 = vadd.f32 %v232, %v214
    %v234 = vadd.f32 %v233, %v217
    %v235 = vadd.f32 %v234, %v219
    %v236 = vrot.slane %v235, 4
    %v237 = vadd.f32 %v235, %v236
    %v238 = vrot.slane %v237, 2
    %v239 = vadd.f32 %v237, %v238
    %v240 = vrot.slane %v239, 1
    %v241 = vadd.f32 %v239, %v240
    %v242 = vmul.f32 %v182, %v182
    %v243 = vmul.f32 %v184, %v184
    %v244 = vmul.f32 %v187, %v187
    %v245 = vmul.f32 %v189, %v189
    %v246 = vmul.f32 %v192, %v192
    %v247 = vmul.f32 %v194, %v194
    %v248 = vmul.f32 %v197, %v197
    %v249 = vmul.f32 %v199, %v199
    %v250 = vmul.f32 %v202, %v202
    %v251 = vmul.f32 %v204, %v204
    %v252 = vmul.f32 %v207, %v207
    %v253 = vmul.f32 %v209, %v209
    %v254 = vmul.f32 %v212, %v212
    %v255 = vmul.f32 %v214, %v214
    %v256 = vmul.f32 %v217, %v217
    %v257 = vmul.f32 %v219, %v219
    %v258 = vadd.f32 %v242, %v243
    %v259 = vadd.f32 %v258, %v244
    %v260 = vadd.f32 %v259, %v245
    %v261 = vadd.f32 %v260, %v246
    %v262 = vadd.f32 %v261, %v247
    %v263 = vadd.f32 %v262, %v248
    %v264 = vadd.f32 %v263, %v249
    %v265 = vadd.f32 %v264, %v250
    %v266 = vadd.f32 %v265, %v251
    %v267 = vadd.f32 %v266, %v252
    %v268 = vadd.f32 %v267, %v253
    %v269 = vadd.f32 %v268, %v254
    %v270 = vadd.f32 %v269, %v255
    %v271 = vadd.f32 %v270, %v256
    %v272 = vadd.f32 %v271, %v257
    %v273 = vrot.slane %v272, 4
    %v274 = vadd.f32 %v272, %v273
    %v275 = vrot.slane %v274, 2
    %v276 = vadd.f32 %v274, %v275
    %v277 = vrot.slane %v276, 1
    %v278 = vadd.f32 %v276, %v277
    %vm279 = vcmask 1040384
    %v280 = vsel %vm279, %v241, %v278
    %281 = vst [vmem:[#allocation7] sm:$0x3] %v280
    // Predicated region
    $region18: #{tpu_custom_call.1} parent=1 // pred_check
      _
    $region19: #{tpu_custom_call.1} parent=1 // pred_check_branch
      %283 = sbr.rel (0) target = $region21
    $region20: #{tpu_custom_call.1} parent=1 // pred_region
      %285 = vsyncadd [#allocation4], 0
      %s287 = sshll.u32 [#allocation7], 4
      %s288 = int_to_ptr.vmem [resolvable:$true] %s287
      %s289 = sshll.u32 %s2, 4
      %s290 = int_to_ptr.hbm [resolvable:$true] %s289
      %292 = dma.vmem_to_hbm [thread:$0]  %s288, 32, %s290, [#allocation4]
    $region21: #{tpu_custom_call.1} parent=1 // pred_fallthru
      _
    // Predicated region
    $region22: #{tpu_custom_call.1} parent=1 // pred_check
      _
    $region23: #{tpu_custom_call.1} parent=1 // pred_check_branch
      %294 = sbr.rel (0) target = $region25
    $region24: #{tpu_custom_call.1} parent=1 // pred_region
      %296 = dma.done [#allocation4], 32
    $region25: #{tpu_custom_call.1} parent=1 // pred_fallthru
      _
    %297 = vsyncpa [#allocation3], 1
    %298 = vsyncpa [#allocation6], 1
    %299 = vsyncpa [#allocation4], 1

</llo_original>
